<compile_context>
chip_gen: v6e
topology: v6e:2x2x1
jax: 0.10.0
libtpu: 0.0.40
codegen_flags: <defaults>
</compile_context>

<pallas_src>
import functools

import jax
import jax.numpy as jnp
from jax import lax
from jax.experimental import pallas as pl
from jax.experimental.pallas import tpu as pltpu

_EPS = 1e-5
# Contract dim 1 of x with dim 1 of W  ==  x @ W.T  (W kept in (out, in) layout).
_DN = (((1,), (1,)), ((), ()))
_H2_SCRATCH_BUDGET = 12 * 2**20     # max VMEM bytes spent keeping h2 resident


# ---------------------------------------------------------------------------
# Shared helpers
# ---------------------------------------------------------------------------
def _project(x_ref, w_ref, b_ref):
    """h2 = x @ W.T + b with f32 accumulation (W in (out, in) layout)."""
    x = x_ref[...]
    w = w_ref[...]
    if x.dtype != w.dtype:                 # bf16-weight option
        x = x.astype(w.dtype)
    return lax.dot_general(x, w, _DN,
                           preferred_element_type=jnp.float32) + b_ref[...]


def _bn_scale_shift(s, sq, gamma, beta, inv_b):
    """Fold BN into (scale, shift) so the per-row op is a single FMA."""
    mean = s * inv_b
    var = jnp.maximum(sq * inv_b - mean * mean, 0.0)   # one-pass, clamped >= 0
    scale = gamma * lax.rsqrt(var + _EPS)              # EUP slot
    return scale, beta - mean * scale


def _masked_rows(h2, i, tile_b, true_b):
    rows = i * tile_b + lax.broadcasted_iota(jnp.int32, (tile_b, 1), 0)
    return jnp.where(rows < true_b, h2, 0.0)


# ---------------------------------------------------------------------------
# Small-batch path: whole problem resident in VMEM, single fused kernel.
# ---------------------------------------------------------------------------
def _fused_kernel(x_ref, w_ref, b_ref, g_ref, bt_ref, o_ref, *, inv_b):
    h2 = _project(x_ref, w_ref, b_ref)
    s = jnp.sum(h2, axis=0, keepdims=True)
    sq = jnp.sum(h2 * h2, axis=0, keepdims=True)
    scale, shift = _bn_scale_shift(s, sq, g_ref[...], bt_ref[...], inv_b)
    o_ref[...] = (h2 * scale + shift).astype(o_ref.dtype)


# ---------------------------------------------------------------------------
# Batch-tiled path: ONE pallas_call, grid = (phase, batch-tile).
#   phase 0: project + accumulate per-feature sum / sumsq
#   phase 1: fold BN constants once (i == 0), normalize every tile
# h2 stays in a VMEM scratch ("resident") or is recomputed ("recompute").
# ---------------------------------------------------------------------------
def _tiled_resident_kernel(x_ref, w_ref, b_ref, g_ref, bt_ref, o_ref,
                           h2_buf, sum_ref, sq_ref, scale_ref, shift_ref,
                           *, inv_b, true_b, tile_b, masked):
    p = pl.program_id(0)      # phase
    i = pl.program_id(1)      # batch tile

    @pl.when(p == 0)
    def _phase0():
        @pl.when(i == 0)
        def _():
            sum_ref[...] = jnp.zeros_like(sum_ref)
            sq_ref[...] = jnp.zeros_like(sq_ref)

        h2 = _project(x_ref, w_ref, b_ref)
        h2_buf[i] = h2                                  # keep pre-BN act in VMEM
        if masked:                                      # padded tail rows
            h2 = _masked_rows(h2, i, tile_b, true_b)
        sum_ref[...] += jnp.sum(h2, axis=0, keepdims=True)
        sq_ref[...] += jnp.sum(h2 * h2, axis=0, keepdims=True)

    @pl.when(p == 1)
    def _phase1():
        @pl.when(i == 0)
        def _():
            scale, shift = _bn_scale_shift(sum_ref[...], sq_ref[...],
                                           g_ref[...], bt_ref[...], inv_b)
            scale_ref[...] = scale
            shift_ref[...] = shift
        o_ref[...] = (h2_buf[i] * scale_ref[...]
                      + shift_ref[...]).astype(o_ref.dtype)


def _tiled_recompute_kernel(x_ref, w_ref, b_ref, g_ref, bt_ref, o_ref,
                            sum_ref, sq_ref, scale_ref, shift_ref,
                            *, inv_b, true_b, tile_b, masked):
    p = pl.program_id(0)
    i = pl.program_id(1)
    h2 = _project(x_ref, w_ref, b_ref)                  # needed in both phases

    @pl.when(p == 0)
    def _phase0():
        @pl.when(i == 0)
        def _():
            sum_ref[...] = jnp.zeros_like(sum_ref)
            sq_ref[...] = jnp.zeros_like(sq_ref)
        h2s = _masked_rows(h2, i, tile_b, true_b) if masked else h2
        sum_ref[...] += jnp.sum(h2s, axis=0, keepdims=True)
        sq_ref[...] += jnp.sum(h2s * h2s, axis=0, keepdims=True)

    @pl.when(p == 1)
    def _phase1():
        @pl.when(i == 0)
        def _():
            scale, shift = _bn_scale_shift(sum_ref[...], sq_ref[...],
                                           g_ref[...], bt_ref[...], inv_b)
            scale_ref[...] = scale
            shift_ref[...] = shift
        o_ref[...] = (h2 * scale_ref[...] + shift_ref[...]).astype(o_ref.dtype)


# ---------------------------------------------------------------------------
# Parameter preparation / wrapper
# ---------------------------------------------------------------------------
def prepare_params(w1, b1, w2, b2, gamma, beta, *, weights_dtype=None):
    """One-time setup.  Folds the two Linear layers (forward has no
    nonlinearity between them):
        (x @ w1.T + b1) @ w2.T + b2  ==  x @ (w2 @ w1).T + (b1 @ w2.T + b2)
    The folded weight keeps PyTorch (out, in) layout so the kernels contract
    with dot_general(((1,),(1,))) and the MXU consumes it directly.
    """
    E = w1.shape[0]
    hp = lax.Precision.HIGHEST
    w = jnp.dot(w2.astype(jnp.float32), w1.astype(jnp.float32), precision=hp)
    b = (jnp.dot(b1.astype(jnp.float32), w2.astype(jnp.float32).T, precision=hp)
         + b2.astype(jnp.float32))
    if weights_dtype is not None:          # e.g. jnp.bfloat16 to halve traffic
        w = w.astype(weights_dtype)
    return dict(w=w, b=b.reshape(1, E),
                gamma=gamma.reshape(1, E).astype(jnp.float32),
                beta=beta.reshape(1, E).astype(jnp.float32))


def _full_spec(shape):
    # grid=() index_map takes no grid arguments.
    return pl.BlockSpec(shape, lambda: (0,) * len(shape))


def _const_spec(shape, *, single_buffer=False):
    """Constant-index BlockSpec; optionally single-buffered (large weights)."""
    index_map = lambda *_: (0,) * len(shape)
    if single_buffer and hasattr(pl, "Buffered"):
        try:
            return pl.BlockSpec(shape, index_map, pipeline_mode=pl.Buffered(1))
        except TypeError:       # older jax without pipeline_mode: fall through
            pass
    return pl.BlockSpec(shape, index_map)


def _choose_tile_b(E):
    # ~8 MiB budget for the double-buffered (avg, out) batch tiles; the rest
    # of the default scoped-VMEM budget (16 MiB v5e / 32 MiB v6e, v7x) is left
    # for the resident h2 scratch, the folded weight and the BN scalars.
    per_row_bytes = 4 * E * 4            # avg + out, 2 buffers each, f32
    t = (8 * 2**20) // max(per_row_bytes, 1)
    return int(max(8, min(1024, (t // 8) * 8)))


def semantic_embedding_forward(avg, params, *, tile_b=None, keep_h2=None):
    """avg: (B, E).  Returns (state_h, state_h) like the PyTorch module."""
    B, E = avg.shape
    w, b = params["w"], params["b"]
    gamma, beta = params["gamma"], params["beta"]
    w_bytes = int(w.size) * w.dtype.itemsize

    if tile_b is None:
        tile_b = _choose_tile_b(E)
    tile_b = max(8, ((int(tile_b) + 7) // 8) * 8)

    # --- Small-batch path: everything comfortably VMEM-resident, one kernel ---
    if B <= tile_b:
        state_h = pl.pallas_call(
            functools.partial(_fused_kernel, inv_b=1.0 / B),
            out_shape=jax.ShapeDtypeStruct((B, E), avg.dtype),
            grid=(),
            in_specs=[
                _full_spec((B, E)),    # avg
                _full_spec((E, E)),    # folded weight (out, in)
                _full_spec((1, E)),    # folded bias
                _full_spec((1, E)),    # gamma
                _full_spec((1, E)),    # beta
            ],
            out_specs=_full_spec((B, E)),
        )(avg, w, b, gamma, beta)
        return state_h, state_h

    # --- Batch-tiled path: grid = (phase, batch-tile), h2 never hits HBM ---
    nb = -(-B // tile_b)
    B_pad = nb * tile_b
    masked = B_pad != B
    avg_p = avg if not masked else jnp.pad(avg, ((0, B_pad - B), (0, 0)))

    if keep_h2 is None:
        keep_h2 = (B_pad * E * 4) <= _H2_SCRATCH_BUDGET

    kern = _tiled_resident_kernel if keep_h2 else _tiled_recompute_kernel
    kernel = functools.partial(kern, inv_b=1.0 / B, true_b=B,
                               tile_b=tile_b, masked=masked)

    scratch = []
    if keep_h2:
        scratch.append(pltpu.VMEM((nb, tile_b, E), jnp.float32))   # h2 resident
    scratch += [pltpu.VMEM((1, E), jnp.float32)] * 4   # sum, sumsq, scale, shift

    if keep_h2:
        # avg is only needed in phase 0: pin its block to tile 0 in phase 1 so
        # the pipeline does not re-read the whole batch from HBM.
        avg_map = lambda p, i: (i * (1 - p), 0)
    else:
        avg_map = lambda p, i: (i, 0)                   # recompute in phase 1
    # The output block stays pinned to tile 0 during phase 0 (never written),
    # so it is only DMA'd back once per tile, during phase 1.
    out_map = lambda p, i: (i * p, 0)

    est = (4 * tile_b * E * 4                           # avg + out, double-buffered
           + 2 * w_bytes                                # folded weight (worst case)
           + (nb * tile_b * E * 4 if keep_h2 else 0)    # h2 scratch
           + 10 * 8 * E * 4                             # (1,E) params / scratch, padded
           + (2 << 20))                                 # slack
    vmem_limit = int(min(est, 48 * 2**20)) if est > 14 * 2**20 else None

    out = pl.pallas_call(
        kernel,
        out_shape=jax.ShapeDtypeStruct((B_pad, E), avg.dtype),
        grid=(2, nb),
        in_specs=[
            pl.BlockSpec((tile_b, E), avg_map),
            _const_spec((E, E), single_buffer=w_bytes >= (2 << 20)),
            _const_spec((1, E)),
            _const_spec((1, E)),
            _const_spec((1, E)),
        ],
        out_specs=pl.BlockSpec((tile_b, E), out_map),
        scratch_shapes=scratch,
        compiler_params=pltpu.CompilerParams(
            dimension_semantics=("arbitrary", "arbitrary"),
            vmem_limit_bytes=vmem_limit),
    )(avg_p, w, b, gamma, beta)

    state_h = out if not masked else out[:B]
    return state_h, state_h


# ---------------------------------------------------------------------------
# Reference & self-test
# ---------------------------------------------------------------------------
def _reference(avg, w1, b1, w2, b2, gamma, beta):
    hp = lax.Precision.HIGHEST
    h1 = jnp.dot(avg, w1.T, precision=hp) + b1
    h2 = jnp.dot(h1, w2.T, precision=hp) + b2
    mean = h2.mean(axis=0, keepdims=True)
    var = ((h2 - mean) ** 2).mean(axis=0, keepdims=True)
    return (h2 - mean) / jnp.sqrt(var + _EPS) * gamma + beta


if __name__ == "__main__":
    embed_size = 128    # lane-dense feature dim

    key = jax.random.PRNGKey(0)
    k_x1, k_x2, k_x3, k_w1, k_w2 = jax.random.split(key, 5)

    # Parameter init mirroring the module's __init_weight:
    # weights ~ U(-0.1, 0.1), biases = 0; BN affine gamma=1, beta=0.
    w1 = jax.random.uniform(k_w1, (embed_size, embed_size),
                            minval=-0.1, maxval=0.1, dtype=jnp.float32)
    b1 = jnp.zeros((embed_size,), jnp.float32)
    w2 = jax.random.uniform(k_w2, (embed_size, embed_size),
                            minval=-0.1, maxval=0.1, dtype=jnp.float32)
    b2 = jnp.zeros((embed_size,), jnp.float32)
    gamma = jnp.ones((embed_size,), jnp.float32)
    beta = jnp.zeros((embed_size,), jnp.float32)

    params = prepare_params(w1, b1, w2, b2, gamma, beta)   # one-time fold

    def check(avg, h, c):
        ref = _reference(avg, w1, b1, w2, b2, gamma, beta)
        assert h.shape == avg.shape
        err = float(jnp.max(jnp.abs(h - ref)))
        assert jnp.allclose(h, ref, atol=1e-3, rtol=1e-3), err
        assert jnp.array_equal(h, c)

    # 1) Small batch -> single fused kernel (whole problem VMEM-resident).
    avg_small = jax.random.normal(k_x1, (16, embed_size), dtype=jnp.float32)
    h, c = semantic_embedding_forward(avg_small, params)
    jax.block_until_ready((h, c)); check(avg_small, h, c)

    # 2) Batch-tiled path, h2 kept in VMEM scratch across the two phases.
    avg_big = jax.random.normal(k_x2, (48, embed_size), dtype=jnp.float32)
    h, c = semantic_embedding_forward(avg_big, params, tile_b=16)
    jax.block_until_ready((h, c)); check(avg_big, h, c)

    # 3) Batch-tiled path, recompute variant (h2 never materialized).
    h, c = semantic_embedding_forward(avg_big, params, tile_b=16, keep_h2=False)
    jax.block_until_ready((h, c)); check(avg_big, h, c)

    # 4) Ragged batch -> padded last tile + masked statistics.
    avg_rag = jax.random.normal(k_x3, (20, embed_size), dtype=jnp.float32)
    h, c = semantic_embedding_forward(avg_rag, params, tile_b=16)
    jax.block_until_ready((h, c)); check(avg_rag, h, c)

    print("KERNEL_OK")
</pallas_src>

<mosaic_0001>
module attributes {stable_mosaic.version = 11 : i64} {
  func.func @_fused_kernel(%arg0: memref<16x128xf32, #tpu.memory_space<vmem>>, %arg1: memref<128x128xf32, #tpu.memory_space<vmem>>, %arg2: memref<1x128xf32, #tpu.memory_space<vmem>>, %arg3: memref<1x128xf32, #tpu.memory_space<vmem>>, %arg4: memref<1x128xf32, #tpu.memory_space<vmem>>, %arg5: memref<16x128xf32, #tpu.memory_space<vmem>>) attributes {dimension_semantics = [], scalar_prefetch = 0 : i64, scratch_operands = 0 : i64, tpu.core_type = #tpu.core_type<tc>} {
    %c0 = arith.constant 0 : index
    %c0_0 = arith.constant 0 : index
    %0 = vector.load %arg0[%c0, %c0_0] : memref<16x128xf32, #tpu.memory_space<vmem>>, vector<16x128xf32>
    %c0_1 = arith.constant 0 : index
    %c0_2 = arith.constant 0 : index
    %1 = vector.load %arg1[%c0_1, %c0_2] : memref<128x128xf32, #tpu.memory_space<vmem>>, vector<128x128xf32>
    %cst = arith.constant dense<0.000000e+00> : vector<16x128xf32>
    %2 = tpu.matmul %0, %1, %cst {dimension_numbers = #tpu.dot_dimension_numbers<[1], [1], [0], [0], [0, 0, 1, 0], [], []>} : vector<16x128xf32>, vector<128x128xf32>, vector<16x128xf32> -> vector<16x128xf32>
    %c0_3 = arith.constant 0 : index
    %c0_4 = arith.constant 0 : index
    %3 = vector.load %arg2[%c0_3, %c0_4] : memref<1x128xf32, #tpu.memory_space<vmem>>, vector<1x128xf32>
    %4 = vector.broadcast %3 : vector<1x128xf32> to vector<16x128xf32>
    %5 = arith.addf %2, %4 : vector<16x128xf32>
    %cst_5 = arith.constant dense<0.000000e+00> : vector<128xf32>
    %6 = vector.multi_reduction <add>, %5, %cst_5 [0] : vector<16x128xf32> to vector<128xf32>
    %7 = vector.shape_cast %6 : vector<128xf32> to vector<1x128xf32>
    %8 = arith.mulf %5, %5 : vector<16x128xf32>
    %cst_6 = arith.constant dense<0.000000e+00> : vector<128xf32>
    %9 = vector.multi_reduction <add>, %8, %cst_6 [0] : vector<16x128xf32> to vector<128xf32>
    %10 = vector.shape_cast %9 : vector<128xf32> to vector<1x128xf32>
    %c0_7 = arith.constant 0 : index
    %c0_8 = arith.constant 0 : index
    %11 = vector.load %arg3[%c0_7, %c0_8] : memref<1x128xf32, #tpu.memory_space<vmem>>, vector<1x128xf32>
    %c0_9 = arith.constant 0 : index
    %c0_10 = arith.constant 0 : index
    %12 = vector.load %arg4[%c0_9, %c0_10] : memref<1x128xf32, #tpu.memory_space<vmem>>, vector<1x128xf32>
    %cst_11 = arith.constant 6.250000e-02 : f32
    %13 = vector.broadcast %cst_11 : f32 to vector<1x128xf32>
    %14 = arith.mulf %7, %13 : vector<1x128xf32>
    %cst_12 = arith.constant 6.250000e-02 : f32
    %15 = vector.broadcast %cst_12 : f32 to vector<1x128xf32>
    %16 = arith.mulf %10, %15 : vector<1x128xf32>
    %17 = arith.mulf %14, %14 : vector<1x128xf32>
    %18 = arith.subf %16, %17 : vector<1x128xf32>
    %cst_13 = arith.constant 0.000000e+00 : f32
    %19 = vector.broadcast %cst_13 : f32 to vector<1x128xf32>
    %20 = arith.maximumf %18, %19 : vector<1x128xf32>
    %cst_14 = arith.constant 9.99999974E-6 : f32
    %21 = vector.broadcast %cst_14 : f32 to vector<1x128xf32>
    %22 = arith.addf %20, %21 : vector<1x128xf32>
    %23 = math.rsqrt %22 : vector<1x128xf32>
    %24 = arith.mulf %11, %23 : vector<1x128xf32>
    %25 = arith.mulf %14, %24 : vector<1x128xf32>
    %26 = arith.subf %12, %25 : vector<1x128xf32>
    %27 = vector.broadcast %24 : vector<1x128xf32> to vector<16x128xf32>
    %28 = arith.mulf %5, %27 : vector<16x128xf32>
    %29 = vector.broadcast %26 : vector<1x128xf32> to vector<16x128xf32>
    %30 = arith.addf %28, %29 : vector<16x128xf32>
    %c0_15 = arith.constant 0 : index
    %c0_16 = arith.constant 0 : index
    %31 = vector.load %arg5[%c0_15, %c0_16] : memref<16x128xf32, #tpu.memory_space<vmem>>, vector<16x128xf32>
    tpu.vector_store %arg5[%c0_15, %c0_16], %30 {strides = array<i32>} : memref<16x128xf32, #tpu.memory_space<vmem>>, vector<16x128xf32>,
    return
  }
}

</mosaic_0001>

<llo_original>
// kernel: tpu_custom_call.1
$region0: #{tpu_custom_call.1}
  #allocation0 [shape = 'u32[]', space=smem, size = 0x4, offset = 0x4, fixed_abs, tag = 'smem constant byte address 0x4 - core index']
  #allocation1 [shape = 'u32[144,128]{1,0:T(1,128)}', space=vmem, size = 0x12000, scoped, tag = 'internal scratch']
  %s0 = inlined_call_operand.hbm [shape: f32[16,128], index: 0, kind: input, shape index: {}]
  %s1 = inlined_call_operand.hbm [shape: f32[128,128], index: 1, kind: input, shape index: {}]
  %s2 = inlined_call_operand.vmem [shape: f32[1,128], index: 2, kind: input, shape index: {}]
  %s3 = inlined_call_operand.vmem [shape: f32[1,128], index: 3, kind: input, shape index: {}]
  %s4 = inlined_call_operand.vmem [shape: f32[1,128], index: 4, kind: input, shape index: {}]
  %s5 = inlined_call_operand.hbm [shape: f32[16,128], index: 5, kind: output, shape index: {}]
  %s6 = sld [smem:[#allocation0]]
  $region38: #{tpu_custom_call.1} parent=0
    _
  %s8 = ssub.s32 1, %s6
  %s9 = scalar_select 0, %s8, %s6
  $region1: #{tpu_custom_call.1} parent=0
    #allocation2 [shape = 'u8[8192]{0}', space=vmem, size = 0x2000, scoped, tag = 'input window, operand 0, single buffered']
    #allocation3 [shape = 's32[1]{0}', space=sflag, size = 0x4, scoped, tag = 'scoped memory for tpu_custom_call.1']
    #allocation4 [shape = 's32[1]{0}', space=sflag, size = 0x4, scoped, tag = 'scoped memory for tpu_custom_call.1']
    #allocation5 [shape = 'u8[65536]{0}', space=vmem, size = 0x10000, scoped, tag = 'input window, operand 1, single buffered']
    #allocation6 [shape = 's32[1]{0}', space=sflag, size = 0x4, scoped, tag = 'scoped memory for tpu_custom_call.1']
    #allocation7 [shape = 'u8[8192]{0}', space=vmem, size = 0x2000, scoped, tag = 'output window, operand 0, single buffered']
    %10 = vsyncpa [#allocation3], 0
    %11 = vsyncpa [#allocation6], 0
    %12 = vsyncpa [#allocation4], 0
    // Predicated region
    $region2: #{tpu_custom_call.1} parent=1 // pred_check
      _
    $region3: #{tpu_custom_call.1} parent=1 // pred_check_branch
      %14 = sbr.rel (0) target = $region5
    $region4: #{tpu_custom_call.1} parent=1 // pred_region
      %s16 = ssub.s32 256, 256
      %17 = vsyncadd [#allocation3], %s16
      %s18 = sshll.u32 [#allocation2], 4
      %s19 = int_to_ptr.vmem [resolvable:$true] %s18
      %24 = dma.hbm_to_vmem [thread:$0]  %s0, 256, %s19, [#allocation3], 128, 128, 8
    $region5: #{tpu_custom_call.1} parent=1 // pred_fallthru
      _
    // Predicated region
    $region6: #{tpu_custom_call.1} parent=1 // pred_check
      _
    $region7: #{tpu_custom_call.1} parent=1 // pred_check_branch
      %26 = sbr.rel (0) target = $region9
    $region8: #{tpu_custom_call.1} parent=1 // pred_region
      %s28 = ssub.s32 2048, 2048
      %29 = vsyncadd [#allocation6], %s28
      %s30 = sshll.u32 [#allocation5], 4
      %s31 = int_to_ptr.vmem [resolvable:$true] %s30
      %36 = dma.hbm_to_vmem [thread:$0]  %s1, 2048, %s31, [#allocation6], 128, 128, 8
    $region9: #{tpu_custom_call.1} parent=1 // pred_fallthru
      _
    // Predicated region
    $region10: #{tpu_custom_call.1} parent=1 // pred_check
      _
    $region11: #{tpu_custom_call.1} parent=1 // pred_check_branch
      %38 = sbr.rel (0) target = $region13
    $region12: #{tpu_custom_call.1} parent=1 // pred_region
      _
    $region13: #{tpu_custom_call.1} parent=1 // pred_fallthru
      _
    // Predicated region
    $region14: #{tpu_custom_call.1} parent=1 // pred_check
      _
    $region15: #{tpu_custom_call.1} parent=1 // pred_check_branch
      %40 = sbr.rel (0) target = $region17
    $region16: #{tpu_custom_call.1} parent=1 // pred_region
      _
    $region17: #{tpu_custom_call.1} parent=1 // pred_fallthru
      _
    // Predicated region
    $region18: #{tpu_custom_call.1} parent=1 // pred_check
      _
    $region19: #{tpu_custom_call.1} parent=1 // pred_check_branch
      %42 = sbr.rel (0) target = $region21
    $region20: #{tpu_custom_call.1} parent=1 // pred_region
      _
    $region21: #{tpu_custom_call.1} parent=1 // pred_fallthru
      _
    // Predicated region
    $region22: #{tpu_custom_call.1} parent=1 // pred_check
      _
    $region23: #{tpu_custom_call.1} parent=1 // pred_check_branch
      %44 = sbr.rel (0) target = $region25
    $region24: #{tpu_custom_call.1} parent=1 // pred_region
      %45 = dma.done [#allocation3], 256
    $region25: #{tpu_custom_call.1} parent=1 // pred_fallthru
      _
    // Predicated region
    $region26: #{tpu_custom_call.1} parent=1 // pred_check
      _
    $region27: #{tpu_custom_call.1} parent=1 // pred_check_branch
      %47 = sbr.rel (0) target = $region29
    $region28: #{tpu_custom_call.1} parent=1 // pred_region
      %48 = dma.done [#allocation6], 2048
    $region29: #{tpu_custom_call.1} parent=1 // pred_fallthru
      _
    %v49 = vld [vmem:[#allocation2] sm:$0xff]
    %v50 = vld [vmem:[#allocation2 + $0x8] sm:$0xff]
    %v51 = vld [vmem:[#allocation5] sm:$0xff]
    %v52 = vld [vmem:[#allocation5 + $0x8] sm:$0xff]
    %v53 = vld [vmem:[#allocation5 + $0x10] sm:$0xff]
    %v54 = vld [vmem:[#allocation5 + $0x18] sm:$0xff]
    %v55 = vld [vmem:[#allocation5 + $0x20] sm:$0xff]
    %v56 = vld [vmem:[#allocation5 + $0x28] sm:$0xff]
    %v57 = vld [vmem:[#allocation5 + $0x30] sm:$0xff]
    %v58 = vld [vmem:[#allocation5 + $0x38] sm:$0xff]
    %v59 = vld [vmem:[#allocation5 + $0x40] sm:$0xff]
    %v60 = vld [vmem:[#allocation5 + $0x48] sm:$0xff]
    %v61 = vld [vmem:[#allocation5 + $0x50] sm:$0xff]
    %v62 = vld [vmem:[#allocation5 + $0x58] sm:$0xff]
    %v63 = vld [vmem:[#allocation5 + $0x60] sm:$0xff]
    %v64 = vld [vmem:[#allocation5 + $0x68] sm:$0xff]
    %v65 = vld [vmem:[#allocation5 + $0x70] sm:$0xff]
    %v66 = vld [vmem:[#allocation5 + $0x78] sm:$0xff]
    %v67 = vld [vmem:[%s2] sm:$0x1]
    %v69 = vlaneseq
    %v70 = vshrl.u32 %v69, 7
    %v71 = vsub.s32 0, %v70
    %v72 = vrot.slane %v67, %v71
    %74 = vmatprep.subr.mxu0 0.0
    %75 = vmatpush1.xpose.msra.mxu0 %v66
    %76 = vmatprep.subr.mxu0 0.0
    %77 = vmatpush1.xpose.msra.mxu0 %v65
    %78 = vmatprep.subr.mxu0 0.0
    %79 = vmatpush1.xpose.msra.mxu0 %v64
    %80 = vmatprep.subr.mxu0 0.0
    %81 = vmatpush1.xpose.msra.mxu0 %v63
    %82 = vmatprep.subr.mxu0 0.0
    %83 = vmatpush1.xpose.msra.mxu0 %v62
    %84 = vmatprep.subr.mxu0 0.0
    %85 = vmatpush1.xpose.msra.mxu0 %v61
    %86 = vmatprep.subr.mxu0 0.0
    %87 = vmatpush1.xpose.msra.mxu0 %v60
    %88 = vmatprep.subr.mxu0 0.0
    %89 = vmatpush1.xpose.msra.mxu0 %v59
    %90 = vmatprep.subr.mxu0 0.0
    %91 = vmatpush1.xpose.msra.mxu0 %v58
    %92 = vmatprep.subr.mxu0 0.0
    %93 = vmatpush1.xpose.msra.mxu0 %v57
    %94 = vmatprep.subr.mxu0 0.0
    %95 = vmatpush1.xpose.msra.mxu0 %v56
    %96 = vmatprep.subr.mxu0 0.0
    %97 = vmatpush1.xpose.msra.mxu0 %v55
    %98 = vmatprep.subr.mxu0 0.0
    %99 = vmatpush1.xpose.msra.mxu0 %v54
    %100 = vmatprep.subr.mxu0 0.0
    %101 = vmatpush1.xpose.msra.mxu0 %v53
    %102 = vmatprep.subr.mxu0 0.0
    %103 = vmatpush1.xpose.msra.mxu0 %v52
    %104 = vmatprep.subr.mxu0 0.0
    %105 = vmatpush1.xpose.msra.mxu0 %v51
    %106 = vmatprep.subr.mxu0 0.0
    %107 = vmatpush2.xpose.msra.mxu0 0.0
    %108 = vmatprep.subr.mxu0 0.0
    %109 = vmatpush2.xpose.msra.mxu0 0.0
    %110 = vmatprep.subr.mxu0 0.0
    %111 = vmatpush2.xpose.msra.mxu0 0.0
    %112 = vmatprep.subr.mxu0 0.0
    %113 = vmatpush2.xpose.msra.mxu0 0.0
    %114 = vmatprep.subr.mxu0 0.0
    %115 = vmatpush2.xpose.msra.mxu0 0.0
    %116 = vmatprep.subr.mxu0 0.0
    %117 = vmatpush2.xpose.msra.mxu0 0.0
    %118 = vmatprep.subr.mxu0 0.0
    %119 = vmatpush2.xpose.msra.mxu0 0.0
    %120 = vmatprep.subr.mxu0 0.0
    %121 = vmatpush2.xpose.msra.mxu0 0.0
    %122 = vmatprep.subr.mxu0 0.0
    %123 = vmatpush2.xpose.msra.mxu0 0.0
    %124 = vmatprep.subr.mxu0 0.0
    %125 = vmatpush2.xpose.msra.mxu0 0.0
    %126 = vmatprep.subr.mxu0 0.0
    %127 = vmatpush2.xpose.msra.mxu0 0.0
    %128 = vmatprep.subr.mxu0 0.0
    %129 = vmatpush2.xpose.msra.mxu0 0.0
    %130 = vmatprep.subr.mxu0 0.0
    %131 = vmatpush2.xpose.msra.mxu0 0.0
    %132 = vmatprep.subr.mxu0 0.0
    %133 = vmatpush2.xpose.msra.mxu0 0.0
    %134 = vmatprep.subr.mxu0 0.0
    %135 = vmatpush2.xpose.msra.mxu0 0.0
    %136 = vmatprep.subr.mxu0 0.0
    %137 = vmatpush2.xpose.msra.mxu0 0.0
    %138 = vmatprep.mubr.f32.mxu0 0.0
    %139 = vmatmul.mubr.f32.gmra.mxu0 %v49
    %v140 = vpop.f32.mrf.mxu0
    %v141 = vadd.f32 %v72, %v140
    %v142 = vpop.f32.mrf.mxu0
    %143 = vmatprep.mubr.f32.mxu0 0.0
    %144 = vmatmul.mubr.f32.gmra.mxu0 %v50
    %v145 = vpop.f32.mrf.mxu0
    %v146 = vadd.f32 %v72, %v145
    %v147 = vpop.f32.mrf.mxu0
    %148 = vdwg.mxu0
    %v149 = vadd.f32 %v141, %v146
    %v150 = vrot.slane %v149, 4
    %v151 = vadd.f32 %v149, %v150
    %v152 = vrot.slane %v151, 2
    %v153 = vadd.f32 %v151, %v152
    %v154 = vrot.slane %v153, 1
    %v155 = vadd.f32 %v153, %v154
    %v156 = vmul.f32 %v141, %v141
    %v157 = vmul.f32 %v146, %v146
    %v158 = vadd.f32 %v156, %v157
    %v159 = vrot.slane %v158, 4
    %v160 = vadd.f32 %v158, %v159
    %v161 = vrot.slane %v160, 2
    %v162 = vadd.f32 %v160, %v161
    %v163 = vrot.slane %v162, 1
    %v164 = vadd.f32 %v162, %v163
    %v165 = vld [vmem:[%s3] sm:$0x1]
    %v166 = vld [vmem:[%s4] sm:$0x1]
    %v167 = vmul.f32 %v155, 0.0625
    %v168 = vmul.f32 %v164, 0.0625
    %v169 = vmul.f32 %v167, %v167
    %v170 = vsub.f32 %v168, %v169
    %v171 = vmax.f32 %v170, 0.0
    %v172 = vadd.f32 %v171, 1e-05
    %v173 = vrsqrt.pop %v172
    %v174 = vmul.f32 %v165, %v173
    %v175 = vmul.f32 %v167, %v174
    %v176 = vsub.f32 %v166, %v175
    %v178 = vlaneseq
    %v179 = vshrl.u32 %v178, 7
    %v180 = vsub.s32 0, %v179
    %v181 = vrot.slane %v174, %v180
    %v183 = vmul.f32 %v141, %v181
    %v184 = vmul.f32 %v146, %v181
    %v186 = vlaneseq
    %v187 = vshrl.u32 %v186, 7
    %v188 = vsub.s32 0, %v187
    %v189 = vrot.slane %v176, %v188
    %v191 = vadd.f32 %v183, %v189
    %v192 = vadd.f32 %v184, %v189
    %193 = vst [vmem:[#allocation7] sm:$0xff] %v191
    %194 = vst [vmem:[#allocation7 + $0x8] sm:$0xff] %v192
    // Predicated region
    $region30: #{tpu_custom_call.1} parent=1 // pred_check
      _
    $region31: #{tpu_custom_call.1} parent=1 // pred_check_branch
      %196 = sbr.rel (0) target = $region33
    $region32: #{tpu_custom_call.1} parent=1 // pred_region
      %s198 = ssub.s32 256, 256
      %199 = vsyncadd [#allocation4], %s198
      %s200 = sshll.u32 [#allocation7], 4
      %s201 = int_to_ptr.vmem [resolvable:$true] %s200
      %206 = dma.vmem_to_hbm [thread:$0]  %s201, 256, %s5, [#allocation4], 128, 128, 8
    $region33: #{tpu_custom_call.1} parent=1 // pred_fallthru
      _
    // Predicated region
    $region34: #{tpu_custom_call.1} parent=1 // pred_check
      _
    $region35: #{tpu_custom_call.1} parent=1 // pred_check_branch
      %208 = sbr.rel (0) target = $region37
    $region36: #{tpu_custom_call.1} parent=1 // pred_region
      %209 = dma.done [#allocation4], 256
    $region37: #{tpu_custom_call.1} parent=1 // pred_fallthru
      _
    %210 = vsyncpa [#allocation3], 1
    %211 = vsyncpa [#allocation6], 1
    %212 = vsyncpa [#allocation4], 1

</llo_original>
